<compile_context>
chip_gen: v7x
topology: tpu7x:2x2x1
jax: 0.10.0
libtpu: 0.0.40
codegen_flags: <defaults>
</compile_context>

<pallas_src>
import functools

import jax
import jax.numpy as jnp
from jax.experimental import pallas as pl
from jax.experimental.pallas import tpu as pltpu


_LANE = 128
_VMEM_BUDGET = 32 * 1024 * 1024   # per-call working-set target (fits v7x's 64 MiB)
_VMEM_LIMIT = 48 * 1024 * 1024    # scoped VMEM limit requested from Mosaic
_BN_EPS = 1e-5
_LRELU_SLOPE = 0.2


def _round_up(x, m):
    return (x + m - 1) // m * m


def _pick_tile_r(R, K, OCp):
    """Largest R-tile (multiple of 8) whose double-buffered working set
    (bf16 input tile + f32 output tile, x2 for pipelining, + weights) fits the
    VMEM budget.  Re-derived per layer, safe on v7x's 64 MiB VMEM."""
    per_row = 2 * K * 2 + 2 * OCp * 4            # 2x bf16 x-tile + 2x f32 y-tile
    fixed = 2 * K * OCp * 2 + 64 * 1024          # weights (double-buffered) + slack
    avail = max(_VMEM_BUDGET - fixed, 1 << 20)
    tile = max(8, min(1024, avail // per_row))
    tile = (tile // 8) * 8
    if tile >= R:
        return _round_up(max(R, 1), 8)
    return tile


# ----------------------------- Pallas kernels -----------------------------

def conv_stats_kernel(x_ref, w_ref, y_ref, sum_ref, ssq_ref):
    """Pass 1: bf16 matmul tile (f32 accumulate) + per-channel sufficient stats.

    sum_ref / ssq_ref have a constant index_map, so they stay resident in VMEM
    across the ("arbitrary") R grid axis and act as cross-tile accumulators."""
    @pl.when(pl.program_id(0) == 0)
    def _init():
        sum_ref[...] = jnp.zeros_like(sum_ref)
        ssq_ref[...] = jnp.zeros_like(ssq_ref)

    y = jnp.dot(x_ref[...], w_ref[...], preferred_element_type=jnp.float32)
    y_ref[...] = y
    sum_ref[...] += jnp.sum(y, axis=0, keepdims=True)
    ssq_ref[...] += jnp.sum(y * y, axis=0, keepdims=True)


def bn_lrelu_kernel(y_ref, sum_ref, ssq_ref, gamma_ref, beta_ref, o_ref, *, inv_r):
    """Pass 2: BatchNorm from sufficient statistics + affine + LeakyReLU(0.2)."""
    mean = sum_ref[...] * inv_r
    var = jnp.maximum(ssq_ref[...] * inv_r - mean * mean, 0.0)   # clamp >= 0
    scale = gamma_ref[...] * jax.lax.rsqrt(var + _BN_EPS)
    shift = beta_ref[...] - mean * scale
    z = y_ref[...] * scale + shift
    o_ref[...] = jnp.where(z >= 0.0, z, _LRELU_SLOPE * z)


def conv_bias_kernel(x_ref, w_ref, b_ref, o_ref):
    """Output layer: bf16 matmul tile (f32 accumulate) + bias (no BN / act)."""
    o_ref[...] = (
        jnp.dot(x_ref[...], w_ref[...], preferred_element_type=jnp.float32)
        + b_ref[...]
    )


# --------------------------- pallas_call wrappers ---------------------------

def _conv_bn_lrelu(patches, w_flat, gamma, beta):
    """patches: (R, K) f32, w_flat: (K, OCp) bf16, gamma/beta: (1, OCp) f32.
    Returns (Rp, OCp) f32 (caller slices padding off)."""
    R, K = patches.shape
    OCp = w_flat.shape[1]
    tile_r = _pick_tile_r(R, K, OCp)
    Rp = _round_up(R, tile_r)
    grid = (Rp // tile_r,)
    x_p = jnp.pad(patches, ((0, Rp - R), (0, 0))).astype(jnp.bfloat16)

    x_spec = pl.BlockSpec((tile_r, K), lambda i: (i, 0))
    w_spec = pl.BlockSpec((K, OCp), lambda i: (0, 0))
    y_spec = pl.BlockSpec((tile_r, OCp), lambda i: (i, 0))
    vec_spec = pl.BlockSpec((1, OCp), lambda i: (0, 0))

    # Pass 1: tiled matmul + cross-tile sum / sum-of-squares accumulation.
    y, s1, s2 = pl.pallas_call(
        conv_stats_kernel,
        out_shape=(jax.ShapeDtypeStruct((Rp, OCp), jnp.float32),
                   jax.ShapeDtypeStruct((1, OCp), jnp.float32),
                   jax.ShapeDtypeStruct((1, OCp), jnp.float32)),
        grid=grid,
        in_specs=[x_spec, w_spec],
        out_specs=(y_spec, vec_spec, vec_spec),
        compiler_params=pltpu.CompilerParams(
            dimension_semantics=("arbitrary",),   # stats accumulate across tiles
            vmem_limit_bytes=_VMEM_LIMIT),
    )(x_p, w_flat)

    # Pass 2: normalize + affine + LeakyReLU; fully parallel over R tiles.
    out = pl.pallas_call(
        functools.partial(bn_lrelu_kernel, inv_r=1.0 / R),   # true R (ignores pad rows)
        out_shape=jax.ShapeDtypeStruct((Rp, OCp), jnp.float32),
        grid=grid,
        in_specs=[y_spec, vec_spec, vec_spec, vec_spec, vec_spec],
        out_specs=y_spec,
        compiler_params=pltpu.CompilerParams(
            dimension_semantics=("parallel",),
            vmem_limit_bytes=_VMEM_LIMIT),
    )(y, s1, s2, gamma, beta)
    return out


def _conv_bias(patches, w_flat, b):
    """Output conv: (R, K) @ (K, OCp) + b.  Returns (Rp, OCp) f32."""
    R, K = patches.shape
    OCp = w_flat.shape[1]
    tile_r = _pick_tile_r(R, K, OCp)
    Rp = _round_up(R, tile_r)
    x_p = jnp.pad(patches, ((0, Rp - R), (0, 0))).astype(jnp.bfloat16)
    return pl.pallas_call(
        conv_bias_kernel,
        out_shape=jax.ShapeDtypeStruct((Rp, OCp), jnp.float32),
        grid=(Rp // tile_r,),
        in_specs=[pl.BlockSpec((tile_r, K), lambda i: (i, 0)),
                  pl.BlockSpec((K, OCp), lambda i: (0, 0)),
                  pl.BlockSpec((1, OCp), lambda i: (0, 0))],
        out_specs=pl.BlockSpec((tile_r, OCp), lambda i: (i, 0)),
        compiler_params=pltpu.CompilerParams(
            dimension_semantics=("parallel",),
            vmem_limit_bytes=_VMEM_LIMIT),
    )(x_p, w_flat, b)


# ------------------------------- JAX glue ----------------------------------

def im2col_nhwc(x, k, stride, padding):
    """x: (N, H, W, C) NHWC -> patches (N*OH*OW, k*k*C) with (kh, kw, c) tap order
    (matches the weight flattening done in init_params).  Stays NHWC end-to-end."""
    N, H, W, C = x.shape
    xp = jnp.pad(x, ((0, 0), (padding, padding), (padding, padding), (0, 0)))
    OH = (H + 2 * padding - k) // stride + 1
    OW = (W + 2 * padding - k) // stride + 1
    cols = []
    for i in range(k):
        for j in range(k):
            cols.append(xp[:, i:i + stride * OH:stride, j:j + stride * OW:stride, :])
    patches = jnp.concatenate(cols, axis=-1)          # (N, OH, OW, k*k*C)
    return patches.reshape(N * OH * OW, k * k * C), N, OH, OW


def init_params(key, input_channel, filter_nums, kernel_size):
    """Weights pre-flattened into im2col row order, zero-padded to lane-dense
    OC (multiple of 128) and cast to bf16 -- all hoisted out of the forward."""
    k = kernel_size
    layers = []
    in_ch = input_channel
    for oc in filter_nums:
        key, kw_key = jax.random.split(key)
        w = jax.random.normal(kw_key, (oc, in_ch, k, k), jnp.float32) * 0.02
        ocp = _round_up(oc, _LANE)
        w_flat = w.transpose(2, 3, 1, 0).reshape(k * k * in_ch, oc)      # (K, OC)
        w_flat = jnp.pad(w_flat, ((0, 0), (0, ocp - oc))).astype(jnp.bfloat16)
        gamma = jnp.pad(jnp.ones((1, oc), jnp.float32), ((0, 0), (0, ocp - oc)))
        beta = jnp.zeros((1, ocp), jnp.float32)
        # NOTE: conv bias omitted on BN layers -- exactly cancelled by BatchNorm's
        # batch-mean subtraction (per performance review).
        layers.append(dict(w_flat=w_flat, gamma=gamma, beta=beta, oc=oc))
        in_ch = oc
    key, kw_key = jax.random.split(key)
    w_out = jax.random.normal(kw_key, (1, filter_nums[-1], k, k), jnp.float32) * 0.02
    ocp = _round_up(1, _LANE)
    w_out_flat = w_out.transpose(2, 3, 1, 0).reshape(k * k * filter_nums[-1], 1)
    w_out_flat = jnp.pad(w_out_flat, ((0, 0), (0, ocp - 1))).astype(jnp.bfloat16)
    b_out = jnp.zeros((1, ocp), jnp.float32)
    return layers, (w_out_flat, b_out)


def discriminator_forward(x_nchw, layer_params, out_params, strides, kernel_size):
    """x: (N, C, H, W) NCHW like the PyTorch module.  Returns (N*OH'*OW', 1),
    identical to `out.view(-1, 1)` of the reference module."""
    x = x_nchw.transpose(0, 2, 3, 1)                  # convert once; NHWC afterwards
    for p, stride in zip(layer_params, strides):
        padding = 0 if stride == 1 else 1
        patches, N, OH, OW = im2col_nhwc(x, kernel_size, stride, padding)
        R = patches.shape[0]
        y = _conv_bn_lrelu(patches, p["w_flat"], p["gamma"], p["beta"])
        x = y[:R, :p["oc"]].reshape(N, OH, OW, p["oc"])   # drop row/lane padding
    # output layer: Conv2d(filter_nums[-1], 1, k, stride=1, padding=0) + bias
    w_out, b_out = out_params
    patches, N, OH, OW = im2col_nhwc(x, kernel_size, 1, 0)
    R = patches.shape[0]
    y = _conv_bias(patches, w_out, b_out)
    # rows enumerate (N, OH, OW); with a single channel this equals NCHW
    # flattening order, i.e. out.view(-1, 1).
    return y[:R, :1]


# --------------------------------- main -------------------------------------

if __name__ == "__main__":
    # Discriminator(input_channel=4, filter_nums=[8, 16], strides=[2, 2], kernel_size=4)
    # (2, 4, 16, 16) -> conv s2 p1 -> (2, 8, 8, 8) -> conv s2 p1 -> (2, 16, 4, 4)
    # -> output conv k4 s1 p0 -> (2, 1, 1, 1) -> view(-1, 1) -> (2, 1)
    input_channel = 4
    filter_nums = [8, 16]
    strides = [2, 2]
    kernel_size = 4

    key = jax.random.PRNGKey(0)
    key, kx = jax.random.split(key)
    x = jax.random.normal(kx, (2, input_channel, 16, 16), jnp.float32)

    layer_params, out_params = init_params(key, input_channel, filter_nums, kernel_size)

    out = discriminator_forward(x, layer_params, out_params, strides, kernel_size)
    out = jax.block_until_ready(out)

    assert out.shape == (2, 1), out.shape
    assert out.dtype == jnp.float32
    print("KERNEL_OK")
</pallas_src>

<mosaic_0001>
module attributes {stable_mosaic.version = 11 : i64} {
  func.func @conv_stats_kernel(%arg0: i32, %arg1: memref<128x64xbf16, #tpu.memory_space<vmem>>, %arg2: memref<64x128xbf16, #tpu.memory_space<vmem>>, %arg3: memref<128x128xf32, #tpu.memory_space<vmem>>, %arg4: memref<1x128xf32, #tpu.memory_space<vmem>>, %arg5: memref<1x128xf32, #tpu.memory_space<vmem>>) attributes {dimension_semantics = [#tpu.dimension_semantics<arbitrary>], iteration_bounds = array<i64: 1>, scalar_prefetch = 0 : i64, scratch_operands = 0 : i64, tpu.core_type = #tpu.core_type<tc>, window_params = [{transform_indices = @transform_0, window_bounds = array<i64: 128, 64>}, {pipeline_mode = #tpu.pipeline_mode<synchronous>, transform_indices = @transform_1, window_bounds = array<i64: 64, 128>}, {transform_indices = @transform_2, window_bounds = array<i64: 128, 128>}, {pipeline_mode = #tpu.pipeline_mode<synchronous>, transform_indices = @transform_3, window_bounds = array<i64: 1, 128>}, {pipeline_mode = #tpu.pipeline_mode<synchronous>, transform_indices = @transform_4, window_bounds = array<i64: 1, 128>}]} {
    %c0_i32 = arith.constant 0 : i32
    %0 = arith.cmpi eq, %arg0, %c0_i32 : i32
    %1 = arith.extui %0 : i1 to i32
    %c0_i32_0 = arith.constant 0 : i32
    %2 = arith.cmpi ne, %1, %c0_i32_0 : i32
    scf.if %2 {
      %cst_16 = arith.constant 0.000000e+00 : f32
      %18 = vector.broadcast %cst_16 : f32 to vector<1x128xf32>
      %c0_17 = arith.constant 0 : index
      %c0_18 = arith.constant 0 : index
      %19 = vector.load %arg4[%c0_17, %c0_18] : memref<1x128xf32, #tpu.memory_space<vmem>>, vector<1x128xf32>
      tpu.vector_store %arg4[%c0_17, %c0_18], %18 {strides = array<i32>} : memref<1x128xf32, #tpu.memory_space<vmem>>, vector<1x128xf32>,
      %cst_19 = arith.constant 0.000000e+00 : f32
      %20 = vector.broadcast %cst_19 : f32 to vector<1x128xf32>
      %c0_20 = arith.constant 0 : index
      %c0_21 = arith.constant 0 : index
      %21 = vector.load %arg5[%c0_20, %c0_21] : memref<1x128xf32, #tpu.memory_space<vmem>>, vector<1x128xf32>
      tpu.vector_store %arg5[%c0_20, %c0_21], %20 {strides = array<i32>} : memref<1x128xf32, #tpu.memory_space<vmem>>, vector<1x128xf32>,
    } else {
    }
    %c0 = arith.constant 0 : index
    %c0_1 = arith.constant 0 : index
    %3 = vector.load %arg1[%c0, %c0_1] : memref<128x64xbf16, #tpu.memory_space<vmem>>, vector<128x64xbf16>
    %c0_2 = arith.constant 0 : index
    %c0_3 = arith.constant 0 : index
    %4 = vector.load %arg2[%c0_2, %c0_3] : memref<64x128xbf16, #tpu.memory_space<vmem>>, vector<64x128xbf16>
    %cst = arith.constant dense<0.000000e+00> : vector<128x128xf32>
    %5 = tpu.matmul %3, %4, %cst {dimension_numbers = #tpu.dot_dimension_numbers<[1], [0], [0], [1], [0, 0, 1, 1], [], []>} : vector<128x64xbf16>, vector<64x128xbf16>, vector<128x128xf32> -> vector<128x128xf32>
    %c0_4 = arith.constant 0 : index
    %c0_5 = arith.constant 0 : index
    %6 = vector.load %arg3[%c0_4, %c0_5] : memref<128x128xf32, #tpu.memory_space<vmem>>, vector<128x128xf32>
    tpu.vector_store %arg3[%c0_4, %c0_5], %5 {strides = array<i32>} : memref<128x128xf32, #tpu.memory_space<vmem>>, vector<128x128xf32>,
    %c0_6 = arith.constant 0 : index
    %c0_7 = arith.constant 0 : index
    %7 = vector.load %arg4[%c0_6, %c0_7] : memref<1x128xf32, #tpu.memory_space<vmem>>, vector<1x128xf32>
    %cst_8 = arith.constant dense<0.000000e+00> : vector<128xf32>
    %8 = vector.multi_reduction <add>, %5, %cst_8 [0] : vector<128x128xf32> to vector<128xf32>
    %9 = vector.shape_cast %8 : vector<128xf32> to vector<1x128xf32>
    %10 = arith.addf %7, %9 : vector<1x128xf32>
    %c0_9 = arith.constant 0 : index
    %c0_10 = arith.constant 0 : index
    %11 = vector.load %arg4[%c0_9, %c0_10] : memref<1x128xf32, #tpu.memory_space<vmem>>, vector<1x128xf32>
    tpu.vector_store %arg4[%c0_9, %c0_10], %10 {strides = array<i32>} : memref<1x128xf32, #tpu.memory_space<vmem>>, vector<1x128xf32>,
    %c0_11 = arith.constant 0 : index
    %c0_12 = arith.constant 0 : index
    %12 = vector.load %arg5[%c0_11, %c0_12] : memref<1x128xf32, #tpu.memory_space<vmem>>, vector<1x128xf32>
    %13 = arith.mulf %5, %5 : vector<128x128xf32>
    %cst_13 = arith.constant dense<0.000000e+00> : vector<128xf32>
    %14 = vector.multi_reduction <add>, %13, %cst_13 [0] : vector<128x128xf32> to vector<128xf32>
    %15 = vector.shape_cast %14 : vector<128xf32> to vector<1x128xf32>
    %16 = arith.addf %12, %15 : vector<1x128xf32>
    %c0_14 = arith.constant 0 : index
    %c0_15 = arith.constant 0 : index
    %17 = vector.load %arg5[%c0_14, %c0_15] : memref<1x128xf32, #tpu.memory_space<vmem>>, vector<1x128xf32>
    tpu.vector_store %arg5[%c0_14, %c0_15], %16 {strides = array<i32>} : memref<1x128xf32, #tpu.memory_space<vmem>>, vector<1x128xf32>,
    return
  }
  func.func @transform_0(%arg0: i32) -> (i32, i32) {
    %c0_i32 = arith.constant 0 : i32
    %c0_i32_0 = arith.constant 0 : i32
    return %arg0, %c0_i32 : i32, i32
  }
  func.func @transform_1(%arg0: i32) -> (i32, i32) {
    %c0_i32 = arith.constant 0 : i32
    %c0_i32_0 = arith.constant 0 : i32
    %c0_i32_1 = arith.constant 0 : i32
    return %c0_i32, %c0_i32_0 : i32, i32
  }
  func.func @transform_2(%arg0: i32) -> (i32, i32) {
    %c0_i32 = arith.constant 0 : i32
    %c0_i32_0 = arith.constant 0 : i32
    return %arg0, %c0_i32 : i32, i32
  }
  func.func @transform_3(%arg0: i32) -> (i32, i32) {
    %c0_i32 = arith.constant 0 : i32
    %c0_i32_0 = arith.constant 0 : i32
    %c0_i32_1 = arith.constant 0 : i32
    return %c0_i32, %c0_i32_0 : i32, i32
  }
  func.func @transform_4(%arg0: i32) -> (i32, i32) {
    %c0_i32 = arith.constant 0 : i32
    %c0_i32_0 = arith.constant 0 : i32
    %c0_i32_1 = arith.constant 0 : i32
    return %c0_i32, %c0_i32_0 : i32, i32
  }
}

</mosaic_0001>

<llo_original>
// kernel: tpu_custom_call.1
$region0: #{tpu_custom_call.1}
  #allocation0 [shape = 'u32[]', space=smem, size = 0x4, offset = 0x4, fixed_abs, tag = 'smem constant byte address 0x4 - core index']
  #allocation1 [shape = 'u32[144,128]{1,0:T(1,128)}', space=vmem, size = 0x12000, scoped, tag = 'internal scratch']
  %s0 = inlined_call_operand.vmem [shape: bf16[128,64], index: 0, kind: input, shape index: {}]
  %s1 = inlined_call_operand.vmem [shape: bf16[64,128], index: 1, kind: input, shape index: {}]
  %s2 = inlined_call_operand.hbm [shape: f32[128,128], index: 2, kind: output, shape index: {0}]
  %s3 = inlined_call_operand.hbm [shape: f32[1,128], index: 3, kind: output, shape index: {1}]
  %s4 = inlined_call_operand.hbm [shape: f32[1,128], index: 4, kind: output, shape index: {2}]
  %5 = xla_tuple %s2, %s3, %s4
  %s6 = sld [smem:[#allocation0]]
  $region38: #{tpu_custom_call.1} parent=0
    _
  %s8 = ssub.s32 1, %s6
  %s9 = scalar_select 0, %s8, %s6
  $region1: #{tpu_custom_call.1} parent=0
    #allocation2 [shape = 'u8[65536]{0}', space=vmem, size = 0x10000, scoped, tag = 'output window, operand 0, single buffered']
    #allocation3 [shape = 's32[1]{0}', space=sflag, size = 0x4, scoped, tag = 'scoped memory for tpu_custom_call.1']
    #allocation4 [shape = 'u8[512]{0}', space=vmem, size = 0x400, scoped, tag = 'output window, operand 1, single buffered']
    #allocation5 [shape = 's32[1]{0}', space=sflag, size = 0x4, scoped, tag = 'scoped memory for tpu_custom_call.1']
    #allocation6 [shape = 'u8[512]{0}', space=vmem, size = 0x400, scoped, tag = 'output window, operand 2, single buffered']
    %10 = vsyncpa [#allocation3], 0
    %11 = vsyncpa [#allocation5], 0
    // Predicated region
    $region2: #{tpu_custom_call.1} parent=1 // pred_check
      _
    $region3: #{tpu_custom_call.1} parent=1 // pred_check_branch
      %13 = sbr.rel (0) target = $region5
    $region4: #{tpu_custom_call.1} parent=1 // pred_region
      _
    $region5: #{tpu_custom_call.1} parent=1 // pred_fallthru
      _
    // Predicated region
    $region6: #{tpu_custom_call.1} parent=1 // pred_check
      _
    $region7: #{tpu_custom_call.1} parent=1 // pred_check_branch
      %15 = sbr.rel (0) target = $region9
    $region8: #{tpu_custom_call.1} parent=1 // pred_region
      _
    $region9: #{tpu_custom_call.1} parent=1 // pred_fallthru
      _
    %p17 = scmp.eq.s32.totalorder 0, 0
    // Predicated region
    $region10: #{tpu_custom_call.1} parent=1 // pred_check
      %p18 = pneg %p17
    $region11: #{tpu_custom_call.1} parent=1 // pred_check_branch
      %20 = sbr.rel (%p18) target = $region13
    $region12: #{tpu_custom_call.1} parent=1 // pred_region
      %21 = vst [vmem:[#allocation4] sm:$0x1] 0.0
      %22 = vst [vmem:[#allocation6] sm:$0x1] 0.0
    $region13: #{tpu_custom_call.1} parent=1 // pred_fallthru
      _
    %v23 = vld [vmem:[%s0] sm:$0xf]
    %v24 = vld [vmem:[%s0 + $0x4] sm:$0xf]
    %v25 = vld [vmem:[%s0 + $0x8] sm:$0xf]
    %v26 = vld [vmem:[%s0 + $0xc] sm:$0xf]
    %v27 = vld [vmem:[%s0 + $0x10] sm:$0xf]
    %v28 = vld [vmem:[%s0 + $0x14] sm:$0xf]
    %v29 = vld [vmem:[%s0 + $0x18] sm:$0xf]
    %v30 = vld [vmem:[%s0 + $0x1c] sm:$0xf]
    %v31 = vld [vmem:[%s0 + $0x20] sm:$0xf]
    %v32 = vld [vmem:[%s0 + $0x24] sm:$0xf]
    %v33 = vld [vmem:[%s0 + $0x28] sm:$0xf]
    %v34 = vld [vmem:[%s0 + $0x2c] sm:$0xf]
    %v35 = vld [vmem:[%s0 + $0x30] sm:$0xf]
    %v36 = vld [vmem:[%s0 + $0x34] sm:$0xf]
    %v37 = vld [vmem:[%s0 + $0x38] sm:$0xf]
    %v38 = vld [vmem:[%s0 + $0x3c] sm:$0xf]
    %v39 = vld [vmem:[%s1] sm:$0xf]
    %v40 = vld [vmem:[%s1 + $0x4] sm:$0xf]
    %v41 = vld [vmem:[%s1 + $0x8] sm:$0xf]
    %v42 = vld [vmem:[%s1 + $0xc] sm:$0xf]
    %v43 = vld [vmem:[%s1 + $0x10] sm:$0xf]
    %v44 = vld [vmem:[%s1 + $0x14] sm:$0xf]
    %v45 = vld [vmem:[%s1 + $0x18] sm:$0xf]
    %v46 = vld [vmem:[%s1 + $0x1c] sm:$0xf]
    %v63 = vunpack.c.l.b16 %v23
    %v64 = vunpack.c.l.b16 %v24
    %v65 = vunpack.c.l.b16 %v25
    %v66 = vunpack.c.l.b16 %v26
    %v67 = vunpack.c.l.b16 %v27
    %v68 = vunpack.c.l.b16 %v28
    %v69 = vunpack.c.l.b16 %v29
    %v70 = vunpack.c.l.b16 %v30
    %v71 = vunpack.c.l.b16 %v31
    %v72 = vunpack.c.l.b16 %v32
    %v73 = vunpack.c.l.b16 %v33
    %v74 = vunpack.c.l.b16 %v34
    %v75 = vunpack.c.l.b16 %v35
    %v76 = vunpack.c.l.b16 %v36
    %v77 = vunpack.c.l.b16 %v37
    %v78 = vunpack.c.l.b16 %v38
    %v79 = vpack.c.b16 %v64, %v63
    %v80 = vpack.c.b16 %v66, %v65
    %v81 = vpack.c.b16 %v68, %v67
    %v82 = vpack.c.b16 %v70, %v69
    %v83 = vpack.c.b16 %v72, %v71
    %v84 = vpack.c.b16 %v74, %v73
    %v85 = vpack.c.b16 %v76, %v75
    %v86 = vpack.c.b16 %v78, %v77
    %v95 = vunpack.c.l.b16 %v39
    %v96 = vunpack.c.l.b16 %v40
    %v97 = vunpack.c.l.b16 %v41
    %v98 = vunpack.c.l.b16 %v42
    %v99 = vunpack.c.l.b16 %v43
    %v100 = vunpack.c.l.b16 %v44
    %v101 = vunpack.c.l.b16 %v45
    %v102 = vunpack.c.l.b16 %v46
    %v103 = vpack.c.b16 %v96, %v95
    %v104 = vpack.c.b16 %v98, %v97
    %v105 = vpack.c.b16 %v100, %v99
    %v106 = vpack.c.b16 %v102, %v101
    %vm111 = vcmask 523264
    %v113 = vsel %vm111, %v79, 0
    %v116 = vsel %vm111, %v80, 0
    %v119 = vsel %vm111, %v81, 0
    %v122 = vsel %vm111, %v82, 0
    %v125 = vsel %vm111, %v83, 0
    %v128 = vsel %vm111, %v84, 0
    %v131 = vsel %vm111, %v85, 0
    %v134 = vsel %vm111, %v86, 0
    %136 = vmatprep.subr.bf16.mxu0 0
    %137 = vmatpush1.bf16.msra.mxu0 %v103
    %138 = vmatprep.subr.bf16.mxu0 0
    %139 = vmatpush1.bf16.msra.mxu0 %v104
    %140 = vmatprep.subr.bf16.mxu0 0
    %141 = vmatpush1.bf16.msra.mxu0 %v105
    %142 = vmatprep.subr.bf16.mxu0 0
    %143 = vmatpush1.bf16.msra.mxu0 %v106
    %144 = vmatprep.subr.bf16.mxu0 0
    %145 = vmatpush1.bf16.msra.mxu0 0
    %146 = vmatprep.subr.bf16.mxu0 0
    %147 = vmatpush1.bf16.msra.mxu0 0
    %148 = vmatprep.subr.bf16.mxu0 0
    %149 = vmatpush1.bf16.msra.mxu0 0
    %150 = vmatprep.subr.bf16.mxu0 0
    %151 = vmatpush1.bf16.msra.mxu0 0
    %152 = vmatprep.subr.bf16.mxu0 0
    %153 = vmatpush1.bf16.msra.mxu0 0
    %154 = vmatprep.subr.bf16.mxu0 0
    %155 = vmatpush1.bf16.msra.mxu0 0
    %156 = vmatprep.subr.bf16.mxu0 0
    %157 = vmatpush1.bf16.msra.mxu0 0
    %158 = vmatprep.subr.bf16.mxu0 0
    %159 = vmatpush1.bf16.msra.mxu0 0
    %160 = vmatprep.subr.bf16.mxu0 0
    %161 = vmatpush1.bf16.msra.mxu0 0
    %162 = vmatprep.subr.bf16.mxu0 0
    %163 = vmatpush1.bf16.msra.mxu0 0
    %164 = vmatprep.subr.bf16.mxu0 0
    %165 = vmatpush1.bf16.msra.mxu0 0
    %166 = vmatprep.subr.bf16.mxu0 0
    %167 = vmatpush1.bf16.msra.mxu0 0
    %168 = vmatprep.mubr.bf16.mxu0 0
    %169 = vmatmul.mubr.bf16.gmra.mrb[0].mxu0 %v113
    %v170 = vpop.f32.mrb[0].mxu0
    %v171 = vadd.f32 0.0, %v170
    %v172 = vpop.f32.mrb[0].mxu0
    %v173 = vpop.f32.mrb[0].mxu0
    %v174 = vadd.f32 0.0, %v173
    %v175 = vpop.f32.mrb[0].mxu0
    %176 = vmatprep.mubr.bf16.mxu0 0
    %177 = vmatmul.mubr.bf16.gmra.mrb[0].mxu0 %v116
    %v178 = vpop.f32.mrb[0].mxu0
    %v179 = vadd.f32 0.0, %v178
    %v180 = vpop.f32.mrb[0].mxu0
    %v181 = vpop.f32.mrb[0].mxu0
    %v182 = vadd.f32 0.0, %v181
    %v183 = vpop.f32.mrb[0].mxu0
    %184 = vmatprep.mubr.bf16.mxu0 0
    %185 = vmatmul.mubr.bf16.gmra.mrb[0].mxu0 %v119
    %v186 = vpop.f32.mrb[0].mxu0
    %v187 = vadd.f32 0.0, %v186
    %v188 = vpop.f32.mrb[0].mxu0
    %v189 = vpop.f32.mrb[0].mxu0
    %v190 = vadd.f32 0.0, %v189
    %v191 = vpop.f32.mrb[0].mxu0
    %192 = vmatprep.mubr.bf16.mxu0 0
    %193 = vmatmul.mubr.bf16.gmra.mrb[0].mxu0 %v122
    %v194 = vpop.f32.mrb[0].mxu0
    %v195 = vadd.f32 0.0, %v194
    %v196 = vpop.f32.mrb[0].mxu0
    %v197 = vpop.f32.mrb[0].mxu0
    %v198 = vadd.f32 0.0, %v197
    %v199 = vpop.f32.mrb[0].mxu0
    %200 = vmatprep.mubr.bf16.mxu0 0
    %201 = vmatmul.mubr.bf16.gmra.mrb[0].mxu0 %v125
    %v202 = vpop.f32.mrb[0].mxu0
    %v203 = vadd.f32 0.0, %v202
    %v204 = vpop.f32.mrb[0].mxu0
    %v205 = vpop.f32.mrb[0].mxu0
    %v206 = vadd.f32 0.0, %v205
    %v207 = vpop.f32.mrb[0].mxu0
    %208 = vmatprep.mubr.bf16.mxu0 0
    %209 = vmatmul.mubr.bf16.gmra.mrb[0].mxu0 %v128
    %v210 = vpop.f32.mrb[0].mxu0
    %v211 = vadd.f32 0.0, %v210
    %v212 = vpop.f32.mrb[0].mxu0
    %v213 = vpop.f32.mrb[0].mxu0
    %v214 = vadd.f32 0.0, %v213
    %v215 = vpop.f32.mrb[0].mxu0
    %216 = vmatprep.mubr.bf16.mxu0 0
    %217 = vmatmul.mubr.bf16.gmra.mrb[0].mxu0 %v131
    %v218 = vpop.f32.mrb[0].mxu0
    %v219 = vadd.f32 0.0, %v218
    %v220 = vpop.f32.mrb[0].mxu0
    %v221 = vpop.f32.mrb[0].mxu0
    %v222 = vadd.f32 0.0, %v221
    %v223 = vpop.f32.mrb[0].mxu0
    %224 = vmatprep.mubr.bf16.mxu0 0
    %225 = vmatmul.mubr.bf16.gmra.mrb[0].mxu0 %v134
    %v226 = vpop.f32.mrb[0].mxu0
    %v227 = vadd.f32 0.0, %v226
    %v228 = vpop.f32.mrb[0].mxu0
    %v229 = vpop.f32.mrb[0].mxu0
    %v230 = vadd.f32 0.0, %v229
    %v231 = vpop.f32.mrb[0].mxu0
    %232 = vdwg.mxu0
    %233 = vst [vmem:[#allocation2] sm:$0xff] %v171
    %234 = vst [vmem:[#allocation2 + $0x8] sm:$0xff] %v174
    %235 = vst [vmem:[#allocation2 + $0x10] sm:$0xff] %v179
    %236 = vst [vmem:[#allocation2 + $0x18] sm:$0xff] %v182
    %237 = vst [vmem:[#allocation2 + $0x20] sm:$0xff] %v187
    %238 = vst [vmem:[#allocation2 + $0x28] sm:$0xff] %v190
    %239 = vst [vmem:[#allocation2 + $0x30] sm:$0xff] %v195
    %240 = vst [vmem:[#allocation2 + $0x38] sm:$0xff] %v198
    %241 = vst [vmem:[#allocation2 + $0x40] sm:$0xff] %v203
    %242 = vst [vmem:[#allocation2 + $0x48] sm:$0xff] %v206
    %243 = vst [vmem:[#allocation2 + $0x50] sm:$0xff] %v211
    %244 = vst [vmem:[#allocation2 + $0x58] sm:$0xff] %v214
    %245 = vst [vmem:[#allocation2 + $0x60] sm:$0xff] %v219
    %246 = vst [vmem:[#allocation2 + $0x68] sm:$0xff] %v222
    %247 = vst [vmem:[#allocation2 + $0x70] sm:$0xff] %v227
    %248 = vst [vmem:[#allocation2 + $0x78] sm:$0xff] %v230
    %v249 = vld [vmem:[#allocation4] sm:$0x1]
    %v250 = vadd.f32 %v171, %v174
    %v251 = vadd.f32 %v250, %v179
    %v252 = vadd.f32 %v251, %v182
    %v253 = vadd.f32 %v252, %v187
    %v254 = vadd.f32 %v253, %v190
    %v255 = vadd.f32 %v254, %v195
    %v256 = vadd.f32 %v255, %v198
    %v257 = vadd.f32 %v256, %v203
    %v258 = vadd.f32 %v257, %v206
    %v259 = vadd.f32 %v258, %v211
    %v260 = vadd.f32 %v259, %v214
    %v261 = vadd.f32 %v260, %v219
    %v262 = vadd.f32 %v261, %v222
    %v263 = vadd.f32 %v262, %v227
    %v264 = vadd.f32 %v263, %v230
    %v265 = vrot.slane %v264, 4
    %v266 = vadd.f32 %v264, %v265
    %v267 = vrot.slane %v266, 2
    %v268 = vadd.f32 %v266, %v267
    %v269 = vrot.slane %v268, 1
    %v270 = vadd.f32 %v268, %v269
    %v271 = vadd.f32 %v249, %v270
    %272 = vst [vmem:[#allocation4] sm:$0x1] %v271
    %v273 = vld [vmem:[#allocation6] sm:$0x1]
    %v274 = vmul.f32 %v171, %v171
    %v275 = vmul.f32 %v174, %v174
    %v276 = vmul.f32 %v179, %v179
    %v277 = vmul.f32 %v182, %v182
    %v278 = vmul.f32 %v187, %v187
    %v279 = vmul.f32 %v190, %v190
    %v280 = vmul.f32 %v195, %v195
    %v281 = vmul.f32 %v198, %v198
    %v282 = vmul.f32 %v203, %v203
    %v283 = vmul.f32 %v206, %v206
    %v284 = vmul.f32 %v211, %v211
    %v285 = vmul.f32 %v214, %v214
    %v286 = vmul.f32 %v219, %v219
    %v287 = vmul.f32 %v222, %v222
    %v288 = vmul.f32 %v227, %v227
    %v289 = vmul.f32 %v230, %v230
    %v290 = vadd.f32 %v274, %v275
    %v291 = vadd.f32 %v290, %v276
    %v292 = vadd.f32 %v291, %v277
    %v293 = vadd.f32 %v292, %v278
    %v294 = vadd.f32 %v293, %v279
    %v295 = vadd.f32 %v294, %v280
    %v296 = vadd.f32 %v295, %v281
    %v297 = vadd.f32 %v296, %v282
    %v298 = vadd.f32 %v297, %v283
    %v299 = vadd.f32 %v298, %v284
    %v300 = vadd.f32 %v299, %v285
    %v301 = vadd.f32 %v300, %v286
    %v302 = vadd.f32 %v301, %v287
    %v303 = vadd.f32 %v302, %v288
    %v304 = vadd.f32 %v303, %v289
    %v305 = vrot.slane %v304, 4
    %v306 = vadd.f32 %v304, %v305
    %v307 = vrot.slane %v306, 2
    %v308 = vadd.f32 %v306, %v307
    %v309 = vrot.slane %v308, 1
    %v310 = vadd.f32 %v308, %v309
    %v311 = vadd.f32 %v273, %v310
    %312 = vst [vmem:[#allocation6] sm:$0x1] %v311
    // Predicated region
    $region14: #{tpu_custom_call.1} parent=1 // pred_check
      _
    $region15: #{tpu_custom_call.1} parent=1 // pred_check_branch
      %314 = sbr.rel (0) target = $region17
    $region16: #{tpu_custom_call.1} parent=1 // pred_region
      %s316 = ssub.s32 2048, 2048
      %317 = vsyncadd [#allocation3], %s316
      %s318 = sshll.u32 [#allocation2], 4
      %s319 = int_to_ptr.vmem [resolvable:$true] %s318
      %324 = dma.vmem_to_hbm [thread:$0]  %s319, 2048, %s2, [#allocation3], 128, 128, 8
    $region17: #{tpu_custom_call.1} parent=1 // pred_fallthru
      _
    // Predicated region
    $region18: #{tpu_custom_call.1} parent=1 // pred_check
      _
    $region19: #{tpu_custom_call.1} parent=1 // pred_check_branch
      %326 = sbr.rel (0) target = $region21
    $region20: #{tpu_custom_call.1} parent=1 // pred_region
      %s328 = ssub.s32 16, 16
      %329 = vsyncadd [#allocation5], %s328
      %s331 = sshll.u32 [#allocation4], 4
      %s332 = int_to_ptr.vmem [resolvable:$true] %s331
      %334 = dma.vmem_to_hbm [thread:$0]  %s332, 16, %s3, [#allocation5]
    $region21: #{tpu_custom_call.1} parent=1 // pred_fallthru
      _
    // Predicated region
    $region22: #{tpu_custom_call.1} parent=1 // pred_check
      _
    $region23: #{tpu_custom_call.1} parent=1 // pred_check_branch
      %336 = sbr.rel (0) target = $region25
    $region24: #{tpu_custom_call.1} parent=1 // pred_region
      %s338 = ssub.s32 16, 16
      %339 = vsyncadd [#allocation5], %s338
      %s341 = sshll.u32 [#allocation6], 4
      %s342 = int_to_ptr.vmem [resolvable:$true] %s341
      %344 = dma.vmem_to_hbm [thread:$0]  %s342, 16, %s4, [#allocation5]
    $region25: #{tpu_custom_call.1} parent=1 // pred_fallthru
      _
    // Predicated region
    $region26: #{tpu_custom_call.1} parent=1 // pred_check
      _
    $region27: #{tpu_custom_call.1} parent=1 // pred_check_branch
      %346 = sbr.rel (0) target = $region29
    $region28: #{tpu_custom_call.1} parent=1 // pred_region
      %347 = dma.done [#allocation3], 2048
    $region29: #{tpu_custom_call.1} parent=1 // pred_fallthru
      _
    // Predicated region
    $region30: #{tpu_custom_call.1} parent=1 // pred_check
      _
    $region31: #{tpu_custom_call.1} parent=1 // pred_check_branch
      %349 = sbr.rel (0) target = $region33
    $region32: #{tpu_custom_call.1} parent=1 // pred_region
      %350 = dma.done [#allocation5], 16
    $region33: #{tpu_custom_call.1} parent=1 // pred_fallthru
      _
    // Predicated region
    $region34: #{tpu_custom_call.1} parent=1 // pred_check
      _
    $region35: #{tpu_custom_call.1} parent=1 // pred_check_branch
      %352 = sbr.rel (0) target = $region37
    $region36: #{tpu_custom_call.1} parent=1 // pred_region
      %353 = dma.done [#allocation5], 16
    $region37: #{tpu_custom_call.1} parent=1 // pred_fallthru
      _
    %354 = vsyncpa [#allocation3], 1
    %355 = vsyncpa [#allocation5], 1

</llo_original>
